<compile_context>
chip_gen: v6e
topology: v6e:2x2x1
jax: 0.10.0
libtpu: 0.0.40
codegen_flags: <defaults>
</compile_context>

<pallas_src>
import functools

import jax
import jax.numpy as jnp
from jax import lax
from jax.experimental import pallas as pl
from jax.experimental.pallas import tpu as pltpu


def _round_up(x, m):
    return (x + m - 1) // m * m


def value_network_kernel(x_ref, w1_ref, w2_ref, pk_ref, o_ref, *,
                         fc1, fc2, compute_dtype):
    """One batch tile; activations carry the batch on the lane axis.

    x_ref  : [TB, in_dim]        row-major input tile (contiguous DMA)
    w1_ref : [fc1, in_dim]       fc1 weight (PyTorch layout), VMEM-resident
    w2_ref : [fc2, fc1]          fc2 weight (PyTorch layout), VMEM-resident
    pk_ref : [fc1+2*fc2+1, 1]    packed [b1; b2; wv; bv] column (f32)
    o_ref  : [1, TB]             value row (lane-dense)
    """
    x = x_ref[...].astype(compute_dtype)

    # fc1 + relu: contract in_dim of both operands (NT matmul) so the result
    # comes out [fc1, TB] with the batch on lanes -- no wrapper transpose.
    h = lax.dot_general(
        w1_ref[...], x,
        dimension_numbers=(((1,), (1,)), ((), ())),
        preferred_element_type=jnp.float32)
    h = jnp.maximum(h + pk_ref[pl.ds(0, fc1), :], 0.0)

    # fc2 + relu: [fc2, TB]
    h = jnp.dot(w2_ref[...], h.astype(compute_dtype),
                preferred_element_type=jnp.float32)
    h = jnp.maximum(h + pk_ref[pl.ds(fc1, fc2), :], 0.0)

    # v head (out_features == 1): VPU multiply + XLU sublane reduce instead of
    # pushing a 1-column matmul through the MXU.
    wv = pk_ref[pl.ds(fc1 + fc2, fc2), :]        # [fc2, 1]
    bv = pk_ref[pl.ds(fc1 + 2 * fc2, 1), :]      # [1, 1]
    o_ref[...] = jnp.sum(h * wv, axis=0, keepdims=True) + bv   # [1, TB]


def _pick_batch_tile(B, block_b, in_dim, fc1, fc2,
                     vmem_budget_bytes=24 * 1024 * 1024):
    """Pick TB (multiple of 128): as large as block_b allows, but
    (a) guarantee >= 2 grid steps when B spans >= 2 lane tiles (v7x megacore),
    (b) keep the per-step live set inside the default scoped-VMEM budget
        (conservative so it also fits v7x's smaller VMEM)."""
    b128 = _round_up(B, 128)
    tb = min(_round_up(block_b, 128), b128)
    if b128 >= 2 * 128:
        tb = min(tb, _round_up(pl.cdiv(b128, 2), 128))

    weight_bytes = (fc1 * in_dim + fc2 * fc1 + fc1 + 2 * fc2 + 1) * 4

    def live_bytes(t):
        # double-buffered x tile + out tile, two f32 intermediates, weights x2.
        return (2 * t * in_dim + 2 * t) * 4 + (fc1 + fc2) * t * 4 + 2 * weight_bytes

    while tb > 128 and live_bytes(tb) > vmem_budget_bytes:
        tb = max(128, _round_up(tb // 2, 128))
    return tb


def value_network_forward(state, params, *, block_b=2048, use_bf16_mxu=None):
    """state: [B, in_dim] f32 -> value [B, 1] f32."""
    w1, w2, packed = params["w1T"], params["w2T"], params["packed"]
    fc1, in_dim_w = w1.shape
    fc2 = w2.shape[0]
    B, in_dim = state.shape
    assert in_dim == in_dim_w
    # pk_ref sublane slices stay aligned because fc dims are multiples of 8.
    assert fc1 % 8 == 0 and fc2 % 8 == 0

    # bf16 MXU operands only pay off once the fc dims are MXU-sized; f32x f32
    # emulation is fine (and bit-tight vs. the reference) at tiny dims.
    if use_bf16_mxu is None:
        use_bf16_mxu = min(fc1, fc2) >= 128
    compute_dtype = jnp.bfloat16 if use_bf16_mxu else jnp.float32
    w1 = w1.astype(compute_dtype)
    w2 = w2.astype(compute_dtype)

    TB = _pick_batch_tile(B, block_b, in_dim, fc1, fc2)
    grid = (pl.cdiv(B, TB),)

    kernel = functools.partial(value_network_kernel, fc1=fc1, fc2=fc2,
                               compute_dtype=compute_dtype)
    out = pl.pallas_call(
        kernel,
        out_shape=jax.ShapeDtypeStruct((1, B), jnp.float32),
        grid=grid,
        in_specs=[
            # batch-tiled input in its natural row-major layout.
            pl.BlockSpec((TB, in_dim), lambda i: (i, 0)),
            # weights / packed params: constant block index -> fetched once,
            # VMEM-resident across the whole batch grid.
            pl.BlockSpec(w1.shape, lambda i: (0, 0)),
            pl.BlockSpec(w2.shape, lambda i: (0, 0)),
            pl.BlockSpec(packed.shape, lambda i: (0, 0)),
        ],
        out_specs=pl.BlockSpec((1, TB), lambda i: (0, i)),
        compiler_params=pltpu.CompilerParams(
            dimension_semantics=("parallel",)),
    )(state, w1, w2, packed)

    return out.reshape(B, 1)


def init_params(key, in_dim, fc1_dims, fc2_dims):
    """PyTorch-style Linear init U(-1/sqrt(fan_in), 1/sqrt(fan_in)).

    Weights kept in PyTorch layout ([out_features, in_features]); biases, the
    v-head weight column and its bias are packed into one [fc1+2*fc2+1, 1]
    buffer for a single small DMA.
    """
    ks = jax.random.split(key, 6)

    def u(k, shape, fan_in):
        bound = 1.0 / (fan_in ** 0.5)
        return jax.random.uniform(k, shape, jnp.float32, -bound, bound)

    w1T = u(ks[0], (fc1_dims, in_dim), in_dim)       # fc1.weight
    b1 = u(ks[1], (fc1_dims, 1), in_dim)             # fc1.bias (column)
    w2T = u(ks[2], (fc2_dims, fc1_dims), fc1_dims)   # fc2.weight
    b2 = u(ks[3], (fc2_dims, 1), fc1_dims)           # fc2.bias (column)
    wv = u(ks[4], (fc2_dims, 1), fc2_dims)           # v.weight^T (column)
    bv = u(ks[5], (1, 1), fc2_dims)                  # v.bias

    packed = jnp.concatenate([b1, b2, wv, bv], axis=0)  # [fc1+2*fc2+1, 1]
    return {"w1T": w1T, "w2T": w2T, "packed": packed,
            "b1": b1, "b2": b2, "wv": wv, "bv": bv}


def reference_forward(state, params, compute_dtype=jnp.float32):
    """Pure-JAX reference; compute_dtype mirrors the kernel's MXU operand cast."""
    cd = compute_dtype
    w1 = params["w1T"].astype(cd)
    w2 = params["w2T"].astype(cd)
    b1, b2 = params["b1"], params["b2"]
    wv, bv = params["wv"], params["bv"]
    h = jnp.dot(state.astype(cd), w1.T, preferred_element_type=jnp.float32)
    h = jnp.maximum(h + b1.T, 0.0)
    h = jnp.dot(h.astype(cd), w2.T, preferred_element_type=jnp.float32)
    h = jnp.maximum(h + b2.T, 0.0)
    return h @ wv + bv.reshape(1, 1)


if __name__ == "__main__":
    key = jax.random.PRNGKey(0)
    k_p1, k_p2, k_s1, k_s2, k_s3 = jax.random.split(key, 5)

    # --- Small config: ValueNetwork(input_dims=(8,), fc1=32, fc2=32) — f32 MXU path.
    in_dim, fc1_dims, fc2_dims = 8, 32, 32
    params = init_params(k_p1, in_dim, fc1_dims, fc2_dims)

    # Case 1: tiny batch (single partial lane tile, single grid step).
    s1 = jax.random.normal(k_s1, (8, in_dim), jnp.float32)
    v1 = value_network_forward(s1, params)
    jax.block_until_ready(v1)
    assert v1.shape == (8, 1)
    assert jnp.allclose(v1, reference_forward(s1, params), atol=1e-4, rtol=1e-4)

    # Case 2: non-multiple-of-128 batch -> 3 grid steps with a partial edge
    # block (no host-side padding), weights VMEM-resident across steps.
    s2 = jax.random.normal(k_s2, (300, in_dim), jnp.float32)
    v2 = value_network_forward(s2, params, block_b=128)
    jax.block_until_ready(v2)
    assert v2.shape == (300, 1)
    assert jnp.allclose(v2, reference_forward(s2, params), atol=1e-4, rtol=1e-4)

    # --- Module-default fc dims (256, 256): bf16 MXU operands auto-enabled,
    # tile capped so the "parallel" batch grid has >=2 steps (v7x megacore).
    fc1_big, fc2_big = 256, 256
    params_big = init_params(k_p2, in_dim, fc1_big, fc2_big)
    s3 = jax.random.normal(k_s3, (1000, in_dim), jnp.float32)
    v3 = value_network_forward(s3, params_big)          # TB=512, 2 grid steps
    jax.block_until_ready(v3)
    assert v3.shape == (1000, 1)
    ref3 = reference_forward(s3, params_big, compute_dtype=jnp.bfloat16)
    assert jnp.allclose(v3, ref3, atol=5e-3, rtol=5e-3)

    print("KERNEL_OK")
</pallas_src>

<mosaic_0001>
module attributes {stable_mosaic.version = 11 : i64} {
  func.func @value_network_kernel(%arg0: i32, %arg1: memref<128x8xf32, #tpu.memory_space<vmem>>, %arg2: memref<32x8xf32, #tpu.memory_space<vmem>>, %arg3: memref<32x32xf32, #tpu.memory_space<vmem>>, %arg4: memref<97x1xf32, #tpu.memory_space<vmem>>, %arg5: memref<1x128xf32, #tpu.memory_space<vmem>>) attributes {dimension_semantics = [#tpu.dimension_semantics<parallel>], iteration_bounds = array<i64: 1>, scalar_prefetch = 0 : i64, scratch_operands = 0 : i64, tpu.core_type = #tpu.core_type<tc>, window_params = [{transform_indices = @transform_0, window_bounds = array<i64: 128, 8>}, {pipeline_mode = #tpu.pipeline_mode<synchronous>, transform_indices = @transform_1, window_bounds = array<i64: 32, 8>}, {pipeline_mode = #tpu.pipeline_mode<synchronous>, transform_indices = @transform_2, window_bounds = array<i64: 32, 32>}, {pipeline_mode = #tpu.pipeline_mode<synchronous>, transform_indices = @transform_3, window_bounds = array<i64: 97, 1>}, {transform_indices = @transform_4, window_bounds = array<i64: 1, 128>}]} {
    %c0 = arith.constant 0 : index
    %c0_0 = arith.constant 0 : index
    %0 = vector.load %arg1[%c0, %c0_0] : memref<128x8xf32, #tpu.memory_space<vmem>>, vector<128x8xf32>
    %c0_1 = arith.constant 0 : index
    %c0_2 = arith.constant 0 : index
    %1 = vector.load %arg2[%c0_1, %c0_2] : memref<32x8xf32, #tpu.memory_space<vmem>>, vector<32x8xf32>
    %cst = arith.constant dense<0.000000e+00> : vector<32x128xf32>
    %2 = tpu.matmul %1, %0, %cst {dimension_numbers = #tpu.dot_dimension_numbers<[1], [1], [0], [0], [0, 0, 1, 0], [], []>} : vector<32x8xf32>, vector<128x8xf32>, vector<32x128xf32> -> vector<32x128xf32>
    %c0_3 = arith.constant 0 : index
    %c0_4 = arith.constant 0 : index
    %3 = vector.load %arg4[%c0_3, %c0_4] : memref<97x1xf32, #tpu.memory_space<vmem>>, vector<32x1xf32>
    %4 = vector.broadcast %3 : vector<32x1xf32> to vector<32x128xf32>
    %5 = arith.addf %2, %4 : vector<32x128xf32>
    %cst_5 = arith.constant 0.000000e+00 : f32
    %6 = vector.broadcast %cst_5 : f32 to vector<32x128xf32>
    %7 = arith.maximumf %5, %6 : vector<32x128xf32>
    %c0_6 = arith.constant 0 : index
    %c0_7 = arith.constant 0 : index
    %8 = vector.load %arg3[%c0_6, %c0_7] : memref<32x32xf32, #tpu.memory_space<vmem>>, vector<32x32xf32>
    %cst_8 = arith.constant dense<0.000000e+00> : vector<32x128xf32>
    %9 = tpu.matmul %8, %7, %cst_8 {dimension_numbers = #tpu.dot_dimension_numbers<[1], [0], [0], [1], [0, 0, 1, 1], [], []>} : vector<32x32xf32>, vector<32x128xf32>, vector<32x128xf32> -> vector<32x128xf32>
    %c32 = arith.constant 32 : index
    %c0_9 = arith.constant 0 : index
    %10 = vector.load %arg4[%c32, %c0_9] : memref<97x1xf32, #tpu.memory_space<vmem>>, vector<32x1xf32>
    %11 = vector.broadcast %10 : vector<32x1xf32> to vector<32x128xf32>
    %12 = arith.addf %9, %11 : vector<32x128xf32>
    %cst_10 = arith.constant 0.000000e+00 : f32
    %13 = vector.broadcast %cst_10 : f32 to vector<32x128xf32>
    %14 = arith.maximumf %12, %13 : vector<32x128xf32>
    %c64 = arith.constant 64 : index
    %c0_11 = arith.constant 0 : index
    %15 = vector.load %arg4[%c64, %c0_11] : memref<97x1xf32, #tpu.memory_space<vmem>>, vector<32x1xf32>
    %c96 = arith.constant 96 : index
    %c0_12 = arith.constant 0 : index
    %16 = vector.load %arg4[%c96, %c0_12] : memref<97x1xf32, #tpu.memory_space<vmem>>, vector<1x1xf32>
    %17 = vector.broadcast %15 : vector<32x1xf32> to vector<32x128xf32>
    %18 = arith.mulf %14, %17 : vector<32x128xf32>
    %cst_13 = arith.constant dense<0.000000e+00> : vector<128xf32>
    %19 = vector.multi_reduction <add>, %18, %cst_13 [0] : vector<32x128xf32> to vector<128xf32>
    %20 = vector.shape_cast %19 : vector<128xf32> to vector<1x128xf32>
    %21 = vector.broadcast %16 : vector<1x1xf32> to vector<1x128xf32>
    %22 = arith.addf %20, %21 : vector<1x128xf32>
    %c0_14 = arith.constant 0 : index
    %c0_15 = arith.constant 0 : index
    %23 = vector.load %arg5[%c0_14, %c0_15] : memref<1x128xf32, #tpu.memory_space<vmem>>, vector<1x128xf32>
    tpu.vector_store %arg5[%c0_14, %c0_15], %22 {strides = array<i32>} : memref<1x128xf32, #tpu.memory_space<vmem>>, vector<1x128xf32>,
    return
  }
  func.func @transform_0(%arg0: i32) -> (i32, i32) {
    %c0_i32 = arith.constant 0 : i32
    %c0_i32_0 = arith.constant 0 : i32
    return %arg0, %c0_i32 : i32, i32
  }
  func.func @transform_1(%arg0: i32) -> (i32, i32) {
    %c0_i32 = arith.constant 0 : i32
    %c0_i32_0 = arith.constant 0 : i32
    %c0_i32_1 = arith.constant 0 : i32
    return %c0_i32, %c0_i32_0 : i32, i32
  }
  func.func @transform_2(%arg0: i32) -> (i32, i32) {
    %c0_i32 = arith.constant 0 : i32
    %c0_i32_0 = arith.constant 0 : i32
    %c0_i32_1 = arith.constant 0 : i32
    return %c0_i32, %c0_i32_0 : i32, i32
  }
  func.func @transform_3(%arg0: i32) -> (i32, i32) {
    %c0_i32 = arith.constant 0 : i32
    %c0_i32_0 = arith.constant 0 : i32
    %c0_i32_1 = arith.constant 0 : i32
    return %c0_i32, %c0_i32_0 : i32, i32
  }
  func.func @transform_4(%arg0: i32) -> (i32, i32) {
    %c0_i32 = arith.constant 0 : i32
    %c0_i32_0 = arith.constant 0 : i32
    return %c0_i32, %arg0 : i32, i32
  }
}

</mosaic_0001>

<llo_original>
// kernel: tpu_custom_call.1
$region0: #{tpu_custom_call.1}
  #allocation0 [shape = 'u32[]', space=smem, size = 0x4, offset = 0x4, fixed_abs, tag = 'smem constant byte address 0x4 - core index']
  #allocation1 [shape = 'u32[144,128]{1,0:T(1,128)}', space=vmem, size = 0x12000, scoped, tag = 'internal scratch']
  %s0 = inlined_call_operand.vmem [shape: f32[8,8], index: 0, kind: input, shape index: {}]
  %s1 = inlined_call_operand.vmem [shape: f32[32,8], index: 1, kind: input, shape index: {}]
  %s2 = inlined_call_operand.vmem [shape: f32[32,32], index: 2, kind: input, shape index: {}]
  %s3 = inlined_call_operand.vmem [shape: f32[97,1], index: 3, kind: input, shape index: {}]
  %s4 = inlined_call_operand.hbm [shape: f32[1,8], index: 4, kind: output, shape index: {}]
  %s5 = sld [smem:[#allocation0]]
  $region26: #{tpu_custom_call.1} parent=0
    _
  %s7 = ssub.s32 1, %s5
  %s8 = scalar_select 0, %s7, %s5
  $region1: #{tpu_custom_call.1} parent=0
    #allocation2 [shape = 'u8[512]{0}', space=vmem, size = 0x400, scoped, tag = 'output window, operand 0, single buffered']
    #allocation3 [shape = 's32[1]{0}', space=sflag, size = 0x4, scoped, tag = 'scoped memory for tpu_custom_call.1']
    %9 = vsyncpa [#allocation3], 0
    // Predicated region
    $region2: #{tpu_custom_call.1} parent=1 // pred_check
      _
    $region3: #{tpu_custom_call.1} parent=1 // pred_check_branch
      %11 = sbr.rel (0) target = $region5
    $region4: #{tpu_custom_call.1} parent=1 // pred_region
      _
    $region5: #{tpu_custom_call.1} parent=1 // pred_fallthru
      _
    // Predicated region
    $region6: #{tpu_custom_call.1} parent=1 // pred_check
      _
    $region7: #{tpu_custom_call.1} parent=1 // pred_check_branch
      %13 = sbr.rel (0) target = $region9
    $region8: #{tpu_custom_call.1} parent=1 // pred_region
      _
    $region9: #{tpu_custom_call.1} parent=1 // pred_fallthru
      _
    // Predicated region
    $region10: #{tpu_custom_call.1} parent=1 // pred_check
      _
    $region11: #{tpu_custom_call.1} parent=1 // pred_check_branch
      %15 = sbr.rel (0) target = $region13
    $region12: #{tpu_custom_call.1} parent=1 // pred_region
      _
    $region13: #{tpu_custom_call.1} parent=1 // pred_fallthru
      _
    // Predicated region
    $region14: #{tpu_custom_call.1} parent=1 // pred_check
      _
    $region15: #{tpu_custom_call.1} parent=1 // pred_check_branch
      %17 = sbr.rel (0) target = $region17
    $region16: #{tpu_custom_call.1} parent=1 // pred_region
      _
    $region17: #{tpu_custom_call.1} parent=1 // pred_fallthru
      _
    %v18 = vld [vmem:[%s0] sm:$0xff]
    %v19 = vld [vmem:[%s0 + $0x8] sm:$0xff]
    %v20 = vld [vmem:[%s0 + $0x10] sm:$0xff]
    %v21 = vld [vmem:[%s0 + $0x18] sm:$0xff]
    %v22 = vld [vmem:[%s0 + $0x20] sm:$0xff]
    %v23 = vld [vmem:[%s0 + $0x28] sm:$0xff]
    %v24 = vld [vmem:[%s0 + $0x30] sm:$0xff]
    %v25 = vld [vmem:[%s0 + $0x38] sm:$0xff]
    %v26 = vld [vmem:[%s0 + $0x40] sm:$0xff]
    %v27 = vld [vmem:[%s0 + $0x48] sm:$0xff]
    %v28 = vld [vmem:[%s0 + $0x50] sm:$0xff]
    %v29 = vld [vmem:[%s0 + $0x58] sm:$0xff]
    %v30 = vld [vmem:[%s0 + $0x60] sm:$0xff]
    %v31 = vld [vmem:[%s0 + $0x68] sm:$0xff]
    %v32 = vld [vmem:[%s0 + $0x70] sm:$0xff]
    %v33 = vld [vmem:[%s0 + $0x78] sm:$0xff]
    %v34 = vld [vmem:[%s1] sm:$0xff]
    %v35 = vld [vmem:[%s1 + $0x8] sm:$0xff]
    %v36 = vld [vmem:[%s1 + $0x10] sm:$0xff]
    %v37 = vld [vmem:[%s1 + $0x18] sm:$0xff]
    %v38 = vld [vmem:[%s3] sm:$0xff]
    %v39 = vld [vmem:[%s3 + $0x8] sm:$0xff]
    %v40 = vld [vmem:[%s3 + $0x10] sm:$0xff]
    %v41 = vld [vmem:[%s3 + $0x18] sm:$0xff]
    %43 = vset.pattern.permute.xlu0 0
    %44 = vperm.xlu0 %43, %v38
    %v45 = vpop.permute.xlu0 %44
    %48 = vset.pattern.permute.xlu0 0
    %49 = vperm.xlu0 %48, %v39
    %v50 = vpop.permute.xlu0 %49
    %53 = vset.pattern.permute.xlu0 0
    %54 = vperm.xlu0 %53, %v40
    %v55 = vpop.permute.xlu0 %54
    %58 = vset.pattern.permute.xlu0 0
    %59 = vperm.xlu0 %58, %v41
    %v60 = vpop.permute.xlu0 %59
    %vm62 = vcmask 64512
    %v64 = vsel %vm62, %v34, 0
    %v67 = vsel %vm62, %v35, 0
    %v70 = vsel %vm62, %v36, 0
    %v73 = vsel %vm62, %v37, 0
    %v76 = vsel %vm62, %v18, 0
    %v79 = vsel %vm62, %v19, 0
    %v82 = vsel %vm62, %v20, 0
    %v85 = vsel %vm62, %v21, 0
    %v88 = vsel %vm62, %v22, 0
    %v91 = vsel %vm62, %v23, 0
    %v94 = vsel %vm62, %v24, 0
    %v97 = vsel %vm62, %v25, 0
    %v100 = vsel %vm62, %v26, 0
    %v103 = vsel %vm62, %v27, 0
    %v106 = vsel %vm62, %v28, 0
    %v109 = vsel %vm62, %v29, 0
    %v112 = vsel %vm62, %v30, 0
    %v115 = vsel %vm62, %v31, 0
    %v118 = vsel %vm62, %v32, 0
    %v121 = vsel %vm62, %v33, 0
    %123 = vmatprep.subr.mxu0 0.0
    %124 = vmatpush1.xpose.msra.mxu0 %v121
    %125 = vmatprep.subr.mxu0 0.0
    %126 = vmatpush1.xpose.msra.mxu0 %v118
    %127 = vmatprep.subr.mxu0 0.0
    %128 = vmatpush1.xpose.msra.mxu0 %v115
    %129 = vmatprep.subr.mxu0 0.0
    %130 = vmatpush1.xpose.msra.mxu0 %v112
    %131 = vmatprep.subr.mxu0 0.0
    %132 = vmatpush1.xpose.msra.mxu0 %v109
    %133 = vmatprep.subr.mxu0 0.0
    %134 = vmatpush1.xpose.msra.mxu0 %v106
    %135 = vmatprep.subr.mxu0 0.0
    %136 = vmatpush1.xpose.msra.mxu0 %v103
    %137 = vmatprep.subr.mxu0 0.0
    %138 = vmatpush1.xpose.msra.mxu0 %v100
    %139 = vmatprep.subr.mxu0 0.0
    %140 = vmatpush1.xpose.msra.mxu0 %v97
    %141 = vmatprep.subr.mxu0 0.0
    %142 = vmatpush1.xpose.msra.mxu0 %v94
    %143 = vmatprep.subr.mxu0 0.0
    %144 = vmatpush1.xpose.msra.mxu0 %v91
    %145 = vmatprep.subr.mxu0 0.0
    %146 = vmatpush1.xpose.msra.mxu0 %v88
    %147 = vmatprep.subr.mxu0 0.0
    %148 = vmatpush1.xpose.msra.mxu0 %v85
    %149 = vmatprep.subr.mxu0 0.0
    %150 = vmatpush1.xpose.msra.mxu0 %v82
    %151 = vmatprep.subr.mxu0 0.0
    %152 = vmatpush1.xpose.msra.mxu0 %v79
    %153 = vmatprep.subr.mxu0 0.0
    %154 = vmatpush1.xpose.msra.mxu0 %v76
    %155 = vmatprep.subr.mxu0 0.0
    %156 = vmatpush2.xpose.msra.mxu0 0.0
    %157 = vmatprep.subr.mxu0 0.0
    %158 = vmatpush2.xpose.msra.mxu0 0.0
    %159 = vmatprep.subr.mxu0 0.0
    %160 = vmatpush2.xpose.msra.mxu0 0.0
    %161 = vmatprep.subr.mxu0 0.0
    %162 = vmatpush2.xpose.msra.mxu0 0.0
    %163 = vmatprep.subr.mxu0 0.0
    %164 = vmatpush2.xpose.msra.mxu0 0.0
    %165 = vmatprep.subr.mxu0 0.0
    %166 = vmatpush2.xpose.msra.mxu0 0.0
    %167 = vmatprep.subr.mxu0 0.0
    %168 = vmatpush2.xpose.msra.mxu0 0.0
    %169 = vmatprep.subr.mxu0 0.0
    %170 = vmatpush2.xpose.msra.mxu0 0.0
    %171 = vmatprep.subr.mxu0 0.0
    %172 = vmatpush2.xpose.msra.mxu0 0.0
    %173 = vmatprep.subr.mxu0 0.0
    %174 = vmatpush2.xpose.msra.mxu0 0.0
    %175 = vmatprep.subr.mxu0 0.0
    %176 = vmatpush2.xpose.msra.mxu0 0.0
    %177 = vmatprep.subr.mxu0 0.0
    %178 = vmatpush2.xpose.msra.mxu0 0.0
    %179 = vmatprep.subr.mxu0 0.0
    %180 = vmatpush2.xpose.msra.mxu0 0.0
    %181 = vmatprep.subr.mxu0 0.0
    %182 = vmatpush2.xpose.msra.mxu0 0.0
    %183 = vmatprep.subr.mxu0 0.0
    %184 = vmatpush2.xpose.msra.mxu0 0.0
    %185 = vmatprep.subr.mxu0 0.0
    %186 = vmatpush2.xpose.msra.mxu0 0.0
    %187 = vmatprep.mubr.f32.mxu0 0.0
    %188 = vmatmul.mubr.f32.gmra.mxu0 %v64
    %v189 = vpop.f32.mrf.mxu0
    %v190 = vadd.f32 %v45, %v189
    %v191 = vpop.f32.mrf.mxu0
    %192 = vmatprep.mubr.f32.mxu0 0.0
    %193 = vmatmul.mubr.f32.gmra.mxu0 %v67
    %v194 = vpop.f32.mrf.mxu0
    %v195 = vadd.f32 %v50, %v194
    %v196 = vpop.f32.mrf.mxu0
    %197 = vmatprep.mubr.f32.mxu0 0.0
    %198 = vmatmul.mubr.f32.gmra.mxu0 %v70
    %v199 = vpop.f32.mrf.mxu0
    %v200 = vadd.f32 %v55, %v199
    %v201 = vpop.f32.mrf.mxu0
    %202 = vmatprep.mubr.f32.mxu0 0.0
    %203 = vmatmul.mubr.f32.gmra.mxu0 %v73
    %v204 = vpop.f32.mrf.mxu0
    %v205 = vadd.f32 %v60, %v204
    %v206 = vpop.f32.mrf.mxu0
    %207 = vdwg.mxu0
    %v208 = vmax.f32 %v190, 0.0
    %v209 = vmax.f32 %v195, 0.0
    %v210 = vmax.f32 %v200, 0.0
    %v211 = vmax.f32 %v205, 0.0
    %v212 = vld [vmem:[%s2] sm:$0xff]
    %v213 = vld [vmem:[%s2 + $0x8] sm:$0xff]
    %v214 = vld [vmem:[%s2 + $0x10] sm:$0xff]
    %v215 = vld [vmem:[%s2 + $0x18] sm:$0xff]
    %v216 = vld [vmem:[%s3 + $0x20] sm:$0xff]
    %v217 = vld [vmem:[%s3 + $0x28] sm:$0xff]
    %v218 = vld [vmem:[%s3 + $0x30] sm:$0xff]
    %v219 = vld [vmem:[%s3 + $0x38] sm:$0xff]
    %221 = vset.pattern.permute.xlu0 0
    %222 = vperm.xlu0 %221, %v216
    %v223 = vpop.permute.xlu0 %222
    %226 = vset.pattern.permute.xlu0 0
    %227 = vperm.xlu0 %226, %v217
    %v228 = vpop.permute.xlu0 %227
    %231 = vset.pattern.permute.xlu0 0
    %232 = vperm.xlu0 %231, %v218
    %v233 = vpop.permute.xlu0 %232
    %236 = vset.pattern.permute.xlu0 0
    %237 = vperm.xlu0 %236, %v219
    %v238 = vpop.permute.xlu0 %237
    %vm240 = vcmask 261120
    %v242 = vsel %vm240, %v212, 0
    %v245 = vsel %vm240, %v213, 0
    %v248 = vsel %vm240, %v214, 0
    %v251 = vsel %vm240, %v215, 0
    %253 = vmatprep.subr.mxu0 0.0
    %254 = vmatpush1.msra.mxu0 0.0
    %255 = vmatprep.subr.mxu0 0.0
    %256 = vmatpush1.msra.mxu0 0.0
    %257 = vmatprep.subr.mxu0 0.0
    %258 = vmatpush1.msra.mxu0 0.0
    %259 = vmatprep.subr.mxu0 0.0
    %260 = vmatpush1.msra.mxu0 0.0
    %261 = vmatprep.subr.mxu0 0.0
    %262 = vmatpush1.msra.mxu0 0.0
    %263 = vmatprep.subr.mxu0 0.0
    %264 = vmatpush1.msra.mxu0 0.0
    %265 = vmatprep.subr.mxu0 0.0
    %266 = vmatpush1.msra.mxu0 0.0
    %267 = vmatprep.subr.mxu0 0.0
    %268 = vmatpush1.msra.mxu0 0.0
    %269 = vmatprep.subr.mxu0 0.0
    %270 = vmatpush1.msra.mxu0 0.0
    %271 = vmatprep.subr.mxu0 0.0
    %272 = vmatpush1.msra.mxu0 0.0
    %273 = vmatprep.subr.mxu0 0.0
    %274 = vmatpush1.msra.mxu0 0.0
    %275 = vmatprep.subr.mxu0 0.0
    %276 = vmatpush1.msra.mxu0 0.0
    %277 = vmatprep.subr.mxu0 0.0
    %278 = vmatpush1.msra.mxu0 %v211
    %279 = vmatprep.subr.mxu0 0.0
    %280 = vmatpush1.msra.mxu0 %v210
    %281 = vmatprep.subr.mxu0 0.0
    %282 = vmatpush1.msra.mxu0 %v209
    %283 = vmatprep.subr.mxu0 0.0
    %284 = vmatpush1.msra.mxu0 %v208
    %285 = vmatprep.subr.mxu0 0.0
    %286 = vmatpush2.msra.mxu0 0.0
    %287 = vmatprep.subr.mxu0 0.0
    %288 = vmatpush2.msra.mxu0 0.0
    %289 = vmatprep.subr.mxu0 0.0
    %290 = vmatpush2.msra.mxu0 0.0
    %291 = vmatprep.subr.mxu0 0.0
    %292 = vmatpush2.msra.mxu0 0.0
    %293 = vmatprep.subr.mxu0 0.0
    %294 = vmatpush2.msra.mxu0 0.0
    %295 = vmatprep.subr.mxu0 0.0
    %296 = vmatpush2.msra.mxu0 0.0
    %297 = vmatprep.subr.mxu0 0.0
    %298 = vmatpush2.msra.mxu0 0.0
    %299 = vmatprep.subr.mxu0 0.0
    %300 = vmatpush2.msra.mxu0 0.0
    %301 = vmatprep.subr.mxu0 0.0
    %302 = vmatpush2.msra.mxu0 0.0
    %303 = vmatprep.subr.mxu0 0.0
    %304 = vmatpush2.msra.mxu0 0.0
    %305 = vmatprep.subr.mxu0 0.0
    %306 = vmatpush2.msra.mxu0 0.0
    %307 = vmatprep.subr.mxu0 0.0
    %308 = vmatpush2.msra.mxu0 0.0
    %309 = vmatprep.subr.mxu0 0.0
    %310 = vmatpush2.msra.mxu0 0.0
    %311 = vmatprep.subr.mxu0 0.0
    %312 = vmatpush2.msra.mxu0 0.0
    %313 = vmatprep.subr.mxu0 0.0
    %314 = vmatpush2.msra.mxu0 0.0
    %315 = vmatprep.subr.mxu0 0.0
    %316 = vmatpush2.msra.mxu0 0.0
    %317 = vmatprep.mubr.f32.mxu0 0.0
    %318 = vmatmul.mubr.f32.gmra.mxu0 %v242
    %v319 = vpop.f32.mrf.mxu0
    %v320 = vadd.f32 %v223, %v319
    %v321 = vpop.f32.mrf.mxu0
    %322 = vmatprep.mubr.f32.mxu0 0.0
    %323 = vmatmul.mubr.f32.gmra.mxu0 %v245
    %v324 = vpop.f32.mrf.mxu0
    %v325 = vadd.f32 %v228, %v324
    %v326 = vpop.f32.mrf.mxu0
    %327 = vmatprep.mubr.f32.mxu0 0.0
    %328 = vmatmul.mubr.f32.gmra.mxu0 %v248
    %v329 = vpop.f32.mrf.mxu0
    %v330 = vadd.f32 %v233, %v329
    %v331 = vpop.f32.mrf.mxu0
    %332 = vmatprep.mubr.f32.mxu0 0.0
    %333 = vmatmul.mubr.f32.gmra.mxu0 %v251
    %v334 = vpop.f32.mrf.mxu0
    %v335 = vadd.f32 %v238, %v334
    %v336 = vpop.f32.mrf.mxu0
    %337 = vdwg.mxu0
    %v338 = vmax.f32 %v320, 0.0
    %v339 = vmax.f32 %v325, 0.0
    %v340 = vmax.f32 %v330, 0.0
    %v341 = vmax.f32 %v335, 0.0
    %v342 = vld [vmem:[%s3 + $0x40] sm:$0xff]
    %v343 = vld [vmem:[%s3 + $0x48] sm:$0xff]
    %v344 = vld [vmem:[%s3 + $0x50] sm:$0xff]
    %v345 = vld [vmem:[%s3 + $0x58] sm:$0xff]
    %v346 = vld [vmem:[%s3 + $0x60] sm:$0x1]
    %348 = vset.pattern.permute.xlu0 0
    %349 = vperm.xlu0 %348, %v342
    %v350 = vpop.permute.xlu0 %349
    %353 = vset.pattern.permute.xlu0 0
    %354 = vperm.xlu0 %353, %v343
    %v355 = vpop.permute.xlu0 %354
    %358 = vset.pattern.permute.xlu0 0
    %359 = vperm.xlu0 %358, %v344
    %v360 = vpop.permute.xlu0 %359
    %363 = vset.pattern.permute.xlu0 0
    %364 = vperm.xlu0 %363, %v345
    %v365 = vpop.permute.xlu0 %364
    %v367 = vmul.f32 %v338, %v350
    %v368 = vmul.f32 %v339, %v355
    %v369 = vmul.f32 %v340, %v360
    %v370 = vmul.f32 %v341, %v365
    %v371 = vadd.f32 %v367, %v368
    %v372 = vadd.f32 %v371, %v369
    %v373 = vadd.f32 %v372, %v370
    %v374 = vrot.slane %v373, 4
    %v375 = vadd.f32 %v373, %v374
    %v376 = vrot.slane %v375, 2
    %v377 = vadd.f32 %v375, %v376
    %v378 = vrot.slane %v377, 1
    %v379 = vadd.f32 %v377, %v378
    %381 = vset.pattern.permute.xlu0 0
    %382 = vperm.xlu0 %381, %v346
    %v383 = vpop.permute.xlu0 %382
    %v385 = vadd.f32 %v379, %v383
    %386 = vst [vmem:[#allocation2] sm:$0x1] %v385
    // Predicated region
    $region18: #{tpu_custom_call.1} parent=1 // pred_check
      _
    $region19: #{tpu_custom_call.1} parent=1 // pred_check_branch
      %388 = sbr.rel (0) target = $region21
    $region20: #{tpu_custom_call.1} parent=1 // pred_region
      %s390 = ssub.s32 16, 16
      %391 = vsyncadd [#allocation3], %s390
      %s393 = sshll.u32 [#allocation2], 4
      %s394 = int_to_ptr.vmem [resolvable:$true] %s393
      %396 = dma.vmem_to_hbm [thread:$0]  %s394, 16, %s4, [#allocation3]
    $region21: #{tpu_custom_call.1} parent=1 // pred_fallthru
      _
    // Predicated region
    $region22: #{tpu_custom_call.1} parent=1 // pred_check
      _
    $region23: #{tpu_custom_call.1} parent=1 // pred_check_branch
      %398 = sbr.rel (0) target = $region25
    $region24: #{tpu_custom_call.1} parent=1 // pred_region
      %399 = dma.done [#allocation3], 16
    $region25: #{tpu_custom_call.1} parent=1 // pred_fallthru
      _
    %400 = vsyncpa [#allocation3], 1

</llo_original>
